<compile_context>
chip_gen: v7x
topology: tpu7x:2x2x1
jax: 0.10.0
libtpu: 0.0.40
codegen_flags: <defaults>
</compile_context>

<pallas_src>
import math

import jax
import jax.numpy as jnp
from jax import lax
from jax.experimental import pallas as pl
from jax.experimental.pallas import tpu as pltpu


# ----------------------------------------------------------------- kernels ---
def encode_kernel(w_t_ref, x_t_ref, w3_ref, z_t_ref, zs_t_ref):
    """z^T = W^T @ x^T  (D, N), plus z^T pre-scaled by weight_three (D, 1).

    Producing the transposed layout here means the decode kernel never has to
    transpose anything, and the w3 scaling is done exactly once (hoisted out
    of the per-edge-tile kernel).
    """
    z_t = jnp.dot(w_t_ref[...], x_t_ref[...],
                  preferred_element_type=jnp.float32)          # (D, N)
    z_t_ref[...] = z_t
    zs_t_ref[...] = z_t * w3_ref[...]                          # (D,1) bcast over lanes


def decode_kernel(zs_t_ref, z_t_ref, src_ref, dst_ref, o_ref):
    """One lane-dense tile of edge scores.

    zs_t_ref: (D, N)  z^T scaled by weight_three   (resident across grid steps)
    z_t_ref : (D, N)  z^T                          (resident across grid steps)
    src_ref : (1, TE) int32 source node ids for this edge tile
    dst_ref : (1, TE) int32 destination node ids
    o_ref   : (1, TE) sigmoid(score) for this edge tile
    """
    D, N = zs_t_ref.shape
    TE = src_ref.shape[1]

    # Gather-via-one-hot matmul: sel[n, t] = (idx[t] == n); rows = Z^T @ sel.
    node_ids = lax.broadcasted_iota(jnp.int32, (N, TE), 0)
    sel_src = (src_ref[...] == node_ids).astype(jnp.float32)   # (N, TE)
    sel_dst = (dst_ref[...] == node_ids).astype(jnp.float32)   # (N, TE)

    rows_src = jnp.dot(zs_t_ref[...], sel_src,
                       preferred_element_type=jnp.float32)     # (D, TE)
    rows_dst = jnp.dot(z_t_ref[...], sel_dst,
                       preferred_element_type=jnp.float32)     # (D, TE)

    # score[t] = sum_d (z[i_t, d] * w3[d]) * z[j_t, d]   -> lane-dense (1, TE)
    s = jnp.sum(rows_src * rows_dst, axis=0, keepdims=True)

    # sigmoid(x) = 0.5 * (tanh(x / 2) + 1): single EUP push per element.
    o_ref[...] = 0.5 * (jnp.tanh(0.5 * s) + 1.0)


# ----------------------------------------------------------------- wrapper ---
def neumf_forward(x, weight, weight_three, train_edges, train_false_edges,
                  *, edge_tile=128):
    """sigmoid( (z[i]*z[j]) @ w3 ) for all train edges then all false edges."""
    N, F = x.shape
    Fw, D = weight.shape
    assert Fw == F and weight_three.shape == (D, 1)

    # Layout plumbing (outside the kernels): present x / W transposed so the
    # encode matmul directly produces the (D, N) layout the decode kernel wants.
    x_t = jnp.transpose(x)          # (F, N)
    w_t = jnp.transpose(weight)     # (D, F)

    z_t, zs_t = pl.pallas_call(
        encode_kernel,
        out_shape=(jax.ShapeDtypeStruct((D, N), jnp.float32),
                   jax.ShapeDtypeStruct((D, N), jnp.float32)),
        grid_spec=pltpu.PrefetchScalarGridSpec(
            num_scalar_prefetch=0,
            grid=(1,),
            in_specs=[pl.BlockSpec((D, F), lambda i: (0, 0)),
                      pl.BlockSpec((F, N), lambda i: (0, 0)),
                      pl.BlockSpec((D, 1), lambda i: (0, 0))],
            out_specs=(pl.BlockSpec((D, N), lambda i: (0, 0)),
                       pl.BlockSpec((D, N), lambda i: (0, 0)))),
        compiler_params=pltpu.CompilerParams(
            dimension_semantics=("arbitrary",)),
    )(w_t, x_t, weight_three)

    # Concatenate true + false edges (matching torch.cat((z1, z2), 0)), pad to
    # a whole number of lane-dense edge tiles (pad edges point at node 0 and
    # are sliced off below).
    edges = jnp.concatenate([train_edges, train_false_edges], axis=0)
    edges = edges.astype(jnp.int32)
    E = edges.shape[0]
    n_blocks = pl.cdiv(E, edge_tile)
    E_pad = n_blocks * edge_tile
    edges = jnp.pad(edges, ((0, E_pad - E), (0, 0)))
    src = edges[:, 0].reshape(1, E_pad)
    dst = edges[:, 1].reshape(1, E_pad)

    scores = pl.pallas_call(
        decode_kernel,
        out_shape=jax.ShapeDtypeStruct((1, E_pad), jnp.float32),
        grid_spec=pltpu.PrefetchScalarGridSpec(
            num_scalar_prefetch=0,
            grid=(n_blocks,),
            in_specs=[pl.BlockSpec((D, N), lambda b: (0, 0)),          # z*w3 ^T (resident)
                      pl.BlockSpec((D, N), lambda b: (0, 0)),          # z^T     (resident)
                      pl.BlockSpec((1, edge_tile), lambda b: (0, b)),  # src ids
                      pl.BlockSpec((1, edge_tile), lambda b: (0, b))], # dst ids
            out_specs=pl.BlockSpec((1, edge_tile), lambda b: (0, b))),
        compiler_params=pltpu.CompilerParams(
            dimension_semantics=("parallel",)),
    )(zs_t, z_t, src, dst)

    # Back to the module's (E, 1) output shape; drop padding.
    return scores.reshape(E_pad, 1)[:E]


# --------------------------------------------------------------- reference ---
def neumf_reference(x, weight, weight_three, train_edges, train_false_edges):
    """Literal translation of the PyTorch forward, in plain JAX."""
    z = x @ weight

    def decode(edges):
        zi = z[edges[:, 0]]
        zj = z[edges[:, 1]]
        return (zi * zj) @ weight_three

    s = jnp.concatenate([decode(train_edges), decode(train_false_edges)], axis=0)
    return jax.nn.sigmoid(s)


# -------------------------------------------------------------------- main ---
if __name__ == "__main__":
    NODES, IN_DIM, OUT_DIM = 256, 64, 32     # node count, input_dim, output_dim
    N_TRUE, N_FALSE = 96, 80                 # |train_edges|, |train_false_edges|

    key = jax.random.PRNGKey(0)
    k_x, k_w, k_w3, k_e1, k_e2 = jax.random.split(key, 5)

    # Node feature matrix x.
    x = 0.1 * jax.random.normal(k_x, (NODES, IN_DIM), dtype=jnp.float32)

    # xavier_init for weight (input_dim, output_dim).
    xav = math.sqrt(6.0 / (IN_DIM + OUT_DIM))
    weight = jax.random.uniform(k_w, (IN_DIM, OUT_DIM),
                                minval=-xav, maxval=xav, dtype=jnp.float32)

    # kaiming_init(a=1, 'sigmoid') for weight_three (output_dim, 1): fan_in = 1.
    kai = math.sqrt(3.0 / 1.0)
    weight_three = jax.random.uniform(k_w3, (OUT_DIM, 1),
                                      minval=-kai, maxval=kai, dtype=jnp.float32)

    train_edges = jax.random.randint(k_e1, (N_TRUE, 2), 0, NODES, dtype=jnp.int32)
    train_false_edges = jax.random.randint(k_e2, (N_FALSE, 2), 0, NODES,
                                           dtype=jnp.int32)

    out = neumf_forward(x, weight, weight_three, train_edges, train_false_edges,
                        edge_tile=128)
    out = jax.block_until_ready(out)

    ref = neumf_reference(x, weight, weight_three, train_edges, train_false_edges)
    assert out.shape == (N_TRUE + N_FALSE, 1)
    assert jnp.allclose(out, ref, atol=2e-3, rtol=0.0), \
        float(jnp.max(jnp.abs(out - ref)))

    print("KERNEL_OK")
</pallas_src>

<mosaic_0001>
module attributes {stable_mosaic.version = 11 : i64} {
  func.func @encode_kernel(%arg0: i32, %arg1: memref<32x64xf32, #tpu.memory_space<vmem>>, %arg2: memref<64x256xf32, #tpu.memory_space<vmem>>, %arg3: memref<32x1xf32, #tpu.memory_space<vmem>>, %arg4: memref<32x256xf32, #tpu.memory_space<vmem>>, %arg5: memref<32x256xf32, #tpu.memory_space<vmem>>) attributes {dimension_semantics = [#tpu.dimension_semantics<arbitrary>], iteration_bounds = array<i64: 1>, scalar_prefetch = 0 : i64, scratch_operands = 0 : i64, tpu.core_type = #tpu.core_type<tc>, window_params = [{pipeline_mode = #tpu.pipeline_mode<synchronous>, transform_indices = @transform_0, window_bounds = array<i64: 32, 64>}, {pipeline_mode = #tpu.pipeline_mode<synchronous>, transform_indices = @transform_1, window_bounds = array<i64: 64, 256>}, {pipeline_mode = #tpu.pipeline_mode<synchronous>, transform_indices = @transform_2, window_bounds = array<i64: 32, 1>}, {pipeline_mode = #tpu.pipeline_mode<synchronous>, transform_indices = @transform_3, window_bounds = array<i64: 32, 256>}, {pipeline_mode = #tpu.pipeline_mode<synchronous>, transform_indices = @transform_4, window_bounds = array<i64: 32, 256>}]} {
    %c0 = arith.constant 0 : index
    %c0_0 = arith.constant 0 : index
    %0 = vector.load %arg1[%c0, %c0_0] : memref<32x64xf32, #tpu.memory_space<vmem>>, vector<32x64xf32>
    %c0_1 = arith.constant 0 : index
    %c0_2 = arith.constant 0 : index
    %1 = vector.load %arg2[%c0_1, %c0_2] : memref<64x256xf32, #tpu.memory_space<vmem>>, vector<64x256xf32>
    %cst = arith.constant dense<0.000000e+00> : vector<32x256xf32>
    %2 = tpu.matmul %0, %1, %cst {dimension_numbers = #tpu.dot_dimension_numbers<[1], [0], [0], [1], [0, 0, 1, 1], [], []>} : vector<32x64xf32>, vector<64x256xf32>, vector<32x256xf32> -> vector<32x256xf32>
    %c0_3 = arith.constant 0 : index
    %c0_4 = arith.constant 0 : index
    %3 = vector.load %arg4[%c0_3, %c0_4] : memref<32x256xf32, #tpu.memory_space<vmem>>, vector<32x256xf32>
    tpu.vector_store %arg4[%c0_3, %c0_4], %2 {strides = array<i32>} : memref<32x256xf32, #tpu.memory_space<vmem>>, vector<32x256xf32>,
    %c0_5 = arith.constant 0 : index
    %c0_6 = arith.constant 0 : index
    %4 = vector.load %arg3[%c0_5, %c0_6] : memref<32x1xf32, #tpu.memory_space<vmem>>, vector<32x1xf32>
    %5 = vector.broadcast %4 : vector<32x1xf32> to vector<32x256xf32>
    %6 = arith.mulf %2, %5 : vector<32x256xf32>
    %c0_7 = arith.constant 0 : index
    %c0_8 = arith.constant 0 : index
    %7 = vector.load %arg5[%c0_7, %c0_8] : memref<32x256xf32, #tpu.memory_space<vmem>>, vector<32x256xf32>
    tpu.vector_store %arg5[%c0_7, %c0_8], %6 {strides = array<i32>} : memref<32x256xf32, #tpu.memory_space<vmem>>, vector<32x256xf32>,
    return
  }
  func.func @transform_0(%arg0: i32) -> (i32, i32) {
    %c0_i32 = arith.constant 0 : i32
    %c0_i32_0 = arith.constant 0 : i32
    %c0_i32_1 = arith.constant 0 : i32
    return %c0_i32, %c0_i32_0 : i32, i32
  }
  func.func @transform_1(%arg0: i32) -> (i32, i32) {
    %c0_i32 = arith.constant 0 : i32
    %c0_i32_0 = arith.constant 0 : i32
    %c0_i32_1 = arith.constant 0 : i32
    return %c0_i32, %c0_i32_0 : i32, i32
  }
  func.func @transform_2(%arg0: i32) -> (i32, i32) {
    %c0_i32 = arith.constant 0 : i32
    %c0_i32_0 = arith.constant 0 : i32
    %c0_i32_1 = arith.constant 0 : i32
    return %c0_i32, %c0_i32_0 : i32, i32
  }
  func.func @transform_3(%arg0: i32) -> (i32, i32) {
    %c0_i32 = arith.constant 0 : i32
    %c0_i32_0 = arith.constant 0 : i32
    %c0_i32_1 = arith.constant 0 : i32
    return %c0_i32, %c0_i32_0 : i32, i32
  }
  func.func @transform_4(%arg0: i32) -> (i32, i32) {
    %c0_i32 = arith.constant 0 : i32
    %c0_i32_0 = arith.constant 0 : i32
    %c0_i32_1 = arith.constant 0 : i32
    return %c0_i32, %c0_i32_0 : i32, i32
  }
}

</mosaic_0001>

<llo_original>
// kernel: tpu_custom_call.1
$region0: #{tpu_custom_call.1}
  #allocation0 [shape = 'u32[]', space=smem, size = 0x4, offset = 0x4, fixed_abs, tag = 'smem constant byte address 0x4 - core index']
  #allocation1 [shape = 'u32[144,128]{1,0:T(1,128)}', space=vmem, size = 0x12000, scoped, tag = 'internal scratch']
  %s0 = inlined_call_operand.vmem [shape: f32[32,64], index: 0, kind: input, shape index: {}]
  %s1 = inlined_call_operand.hbm [shape: f32[64,256], index: 1, kind: input, shape index: {}]
  %s2 = inlined_call_operand.vmem [shape: f32[32,1], index: 2, kind: input, shape index: {}]
  %s3 = inlined_call_operand.hbm [shape: f32[32,256], index: 3, kind: output, shape index: {0}]
  %s4 = inlined_call_operand.hbm [shape: f32[32,256], index: 4, kind: output, shape index: {1}]
  %5 = xla_tuple %s3, %s4
  %s6 = sld [smem:[#allocation0]]
  $region34: #{tpu_custom_call.1} parent=0
    _
  %s8 = ssub.s32 1, %s6
  %s9 = scalar_select 0, %s8, %s6
  $region1: #{tpu_custom_call.1} parent=0
    #allocation2 [shape = 'u8[65536]{0}', space=vmem, size = 0x10000, scoped, tag = 'input window, operand 1, single buffered']
    #allocation3 [shape = 's32[1]{0}', space=sflag, size = 0x4, scoped, tag = 'scoped memory for tpu_custom_call.1']
    #allocation4 [shape = 's32[1]{0}', space=sflag, size = 0x4, scoped, tag = 'scoped memory for tpu_custom_call.1']
    #allocation5 [shape = 'u8[32768]{0}', space=vmem, size = 0x8000, scoped, tag = 'output window, operand 0, single buffered']
    #allocation6 [shape = 'u8[32768]{0}', space=vmem, size = 0x8000, scoped, tag = 'output window, operand 1, single buffered']
    #allocation7 [shape = 's32[1]{0}', space=sflag, size = 0x4, scoped, tag = 'scoped memory for tpu_custom_call.1']
    %10 = vsyncpa [#allocation3], 0
    %11 = vsyncpa [#allocation4], 0
    %12 = vsyncpa [#allocation7], 0
    // Predicated region
    $region2: #{tpu_custom_call.1} parent=1 // pred_check
      _
    $region3: #{tpu_custom_call.1} parent=1 // pred_check_branch
      %14 = sbr.rel (0) target = $region5
    $region4: #{tpu_custom_call.1} parent=1 // pred_region
      _
    $region5: #{tpu_custom_call.1} parent=1 // pred_fallthru
      _
    // Predicated region
    $region6: #{tpu_custom_call.1} parent=1 // pred_check
      _
    $region7: #{tpu_custom_call.1} parent=1 // pred_check_branch
      %16 = sbr.rel (0) target = $region9
    $region8: #{tpu_custom_call.1} parent=1 // pred_region
      %s18 = ssub.s32 2048, 2048
      %19 = vsyncadd [#allocation3], %s18
      %s20 = sshll.u32 [#allocation2], 4
      %s21 = int_to_ptr.vmem [resolvable:$true] %s20
      %26 = dma.hbm_to_vmem [thread:$0]  %s1, 2048, %s21, [#allocation3], 256, 256, 16
    $region9: #{tpu_custom_call.1} parent=1 // pred_fallthru
      _
    // Predicated region
    $region10: #{tpu_custom_call.1} parent=1 // pred_check
      _
    $region11: #{tpu_custom_call.1} parent=1 // pred_check_branch
      %28 = sbr.rel (0) target = $region13
    $region12: #{tpu_custom_call.1} parent=1 // pred_region
      _
    $region13: #{tpu_custom_call.1} parent=1 // pred_fallthru
      _
    // Predicated region
    $region14: #{tpu_custom_call.1} parent=1 // pred_check
      _
    $region15: #{tpu_custom_call.1} parent=1 // pred_check_branch
      %30 = sbr.rel (0) target = $region17
    $region16: #{tpu_custom_call.1} parent=1 // pred_region
      %31 = dma.done [#allocation3], 2048
    $region17: #{tpu_custom_call.1} parent=1 // pred_fallthru
      _
    %v32 = vld [vmem:[%s0] sm:$0xff]
    %v33 = vld [vmem:[%s0 + $0x8] sm:$0xff]
    %v34 = vld [vmem:[%s0 + $0x10] sm:$0xff]
    %v35 = vld [vmem:[%s0 + $0x18] sm:$0xff]
    %v36 = vld [vmem:[#allocation2] sm:$0xff]
    %v37 = vld [vmem:[#allocation2 + $0x8] sm:$0xff]
    %v38 = vld [vmem:[#allocation2 + $0x10] sm:$0xff]
    %v39 = vld [vmem:[#allocation2 + $0x18] sm:$0xff]
    %v40 = vld [vmem:[#allocation2 + $0x20] sm:$0xff]
    %v41 = vld [vmem:[#allocation2 + $0x28] sm:$0xff]
    %v42 = vld [vmem:[#allocation2 + $0x30] sm:$0xff]
    %v43 = vld [vmem:[#allocation2 + $0x38] sm:$0xff]
    %v44 = vld [vmem:[#allocation2 + $0x40] sm:$0xff]
    %v45 = vld [vmem:[#allocation2 + $0x48] sm:$0xff]
    %v46 = vld [vmem:[#allocation2 + $0x50] sm:$0xff]
    %v47 = vld [vmem:[#allocation2 + $0x58] sm:$0xff]
    %v48 = vld [vmem:[#allocation2 + $0x60] sm:$0xff]
    %v49 = vld [vmem:[#allocation2 + $0x68] sm:$0xff]
    %v50 = vld [vmem:[#allocation2 + $0x70] sm:$0xff]
    %v51 = vld [vmem:[#allocation2 + $0x78] sm:$0xff]
    %vm52 = vcmask 523264
    %v54 = vsel %vm52, %v32, 0
    %v57 = vsel %vm52, %v33, 0
    %v60 = vsel %vm52, %v34, 0
    %v63 = vsel %vm52, %v35, 0
    %65 = vmatprep.subr.mxu0 %v37
    %66 = vmatpush1.msra.mxu0 %v36
    %67 = vmatprep.subr.mxu0 %v39
    %68 = vmatpush1.msra.mxu0 %v38
    %69 = vmatprep.subr.mxu0 %v41
    %70 = vmatpush1.msra.mxu0 %v40
    %71 = vmatprep.subr.mxu0 %v43
    %72 = vmatpush1.msra.mxu0 %v42
    %73 = vmatprep.subr.mxu0 %v45
    %74 = vmatpush1.msra.mxu0 %v44
    %75 = vmatprep.subr.mxu0 %v47
    %76 = vmatpush1.msra.mxu0 %v46
    %77 = vmatprep.subr.mxu0 %v49
    %78 = vmatpush1.msra.mxu0 %v48
    %79 = vmatprep.subr.mxu0 %v51
    %80 = vmatpush1.msra.mxu0 %v50
    %81 = vmatprep.subr.mxu0 0.0
    %82 = vmatpush1.msra.mxu0 0.0
    %83 = vmatprep.subr.mxu0 0.0
    %84 = vmatpush1.msra.mxu0 0.0
    %85 = vmatprep.subr.mxu0 0.0
    %86 = vmatpush1.msra.mxu0 0.0
    %87 = vmatprep.subr.mxu0 0.0
    %88 = vmatpush1.msra.mxu0 0.0
    %89 = vmatprep.subr.mxu0 0.0
    %90 = vmatpush1.msra.mxu0 0.0
    %91 = vmatprep.subr.mxu0 0.0
    %92 = vmatpush1.msra.mxu0 0.0
    %93 = vmatprep.subr.mxu0 0.0
    %94 = vmatpush1.msra.mxu0 0.0
    %95 = vmatprep.subr.mxu0 0.0
    %96 = vmatpush1.msra.mxu0 0.0
    %97 = vmatprep.subr.mxu0 0.0
    %98 = vmatpush1.msra.mxu0 0.0
    %99 = vmatprep.subr.mxu0 0.0
    %100 = vmatpush1.msra.mxu0 0.0
    %101 = vmatprep.subr.mxu0 0.0
    %102 = vmatpush1.msra.mxu0 0.0
    %103 = vmatprep.subr.mxu0 0.0
    %104 = vmatpush1.msra.mxu0 0.0
    %105 = vmatprep.subr.mxu0 0.0
    %106 = vmatpush1.msra.mxu0 0.0
    %107 = vmatprep.subr.mxu0 0.0
    %108 = vmatpush1.msra.mxu0 0.0
    %109 = vmatprep.subr.mxu0 0.0
    %110 = vmatpush1.msra.mxu0 0.0
    %111 = vmatprep.subr.mxu0 0.0
    %112 = vmatpush1.msra.mxu0 0.0
    %113 = vmatprep.subr.mxu0 0.0
    %114 = vmatpush1.msra.mxu0 0.0
    %115 = vmatprep.subr.mxu0 0.0
    %116 = vmatpush1.msra.mxu0 0.0
    %117 = vmatprep.subr.mxu0 0.0
    %118 = vmatpush1.msra.mxu0 0.0
    %119 = vmatprep.subr.mxu0 0.0
    %120 = vmatpush1.msra.mxu0 0.0
    %121 = vmatprep.subr.mxu0 0.0
    %122 = vmatpush1.msra.mxu0 0.0
    %123 = vmatprep.subr.mxu0 0.0
    %124 = vmatpush1.msra.mxu0 0.0
    %125 = vmatprep.subr.mxu0 0.0
    %126 = vmatpush1.msra.mxu0 0.0
    %127 = vmatprep.subr.mxu0 0.0
    %128 = vmatpush1.msra.mxu0 0.0
    %129 = vmatprep.mubr.f32.mxu0 0.0
    %130 = vmatmul.mubr.f32.gmra.mrb[0].mxu0 %v54
    %v131 = vpop.f32.mrb[0].mxu0
    %v132 = vadd.f32 0.0, %v131
    %v133 = vpop.f32.mrb[0].mxu0
    %v134 = vadd.f32 0.0, %v133
    %135 = vmatprep.mubr.f32.mxu0 0.0
    %136 = vmatmul.mubr.f32.gmra.mrb[0].mxu0 %v57
    %v137 = vpop.f32.mrb[0].mxu0
    %v138 = vadd.f32 0.0, %v137
    %v139 = vpop.f32.mrb[0].mxu0
    %v140 = vadd.f32 0.0, %v139
    %141 = vmatprep.mubr.f32.mxu0 0.0
    %142 = vmatmul.mubr.f32.gmra.mrb[0].mxu0 %v60
    %v143 = vpop.f32.mrb[0].mxu0
    %v144 = vadd.f32 0.0, %v143
    %v145 = vpop.f32.mrb[0].mxu0
    %v146 = vadd.f32 0.0, %v145
    %147 = vmatprep.mubr.f32.mxu0 0.0
    %148 = vmatmul.mubr.f32.gmra.mrb[0].mxu0 %v63
    %v149 = vpop.f32.mrb[0].mxu0
    %v150 = vadd.f32 0.0, %v149
    %v151 = vpop.f32.mrb[0].mxu0
    %v152 = vadd.f32 0.0, %v151
    %153 = vdwg.mxu0
    %154 = vst [vmem:[#allocation5] sm:$0xff] %v132
    %155 = vst [vmem:[#allocation5 + $0x8] sm:$0xff] %v134
    %156 = vst [vmem:[#allocation5 + $0x10] sm:$0xff] %v138
    %157 = vst [vmem:[#allocation5 + $0x18] sm:$0xff] %v140
    %158 = vst [vmem:[#allocation5 + $0x20] sm:$0xff] %v144
    %159 = vst [vmem:[#allocation5 + $0x28] sm:$0xff] %v146
    %160 = vst [vmem:[#allocation5 + $0x30] sm:$0xff] %v150
    %161 = vst [vmem:[#allocation5 + $0x38] sm:$0xff] %v152
    %v162 = vld [vmem:[%s2] sm:$0xff]
    %v163 = vld [vmem:[%s2 + $0x8] sm:$0xff]
    %v164 = vld [vmem:[%s2 + $0x10] sm:$0xff]
    %v165 = vld [vmem:[%s2 + $0x18] sm:$0xff]
    %167 = vset.pattern.permute.xlu0 0
    %168 = vperm.xlu0 %167, %v162
    %v169 = vpop.permute.xlu0 %168
    %172 = vset.pattern.permute.xlu0 0
    %173 = vperm.xlu0 %172, %v163
    %v174 = vpop.permute.xlu0 %173
    %177 = vset.pattern.permute.xlu0 0
    %178 = vperm.xlu0 %177, %v164
    %v179 = vpop.permute.xlu0 %178
    %182 = vset.pattern.permute.xlu0 0
    %183 = vperm.xlu0 %182, %v165
    %v184 = vpop.permute.xlu0 %183
    %v186 = vmul.f32 %v132, %v169
    %v187 = vmul.f32 %v134, %v169
    %v188 = vmul.f32 %v138, %v174
    %v189 = vmul.f32 %v140, %v174
    %v190 = vmul.f32 %v144, %v179
    %v191 = vmul.f32 %v146, %v179
    %v192 = vmul.f32 %v150, %v184
    %v193 = vmul.f32 %v152, %v184
    %194 = vst [vmem:[#allocation6] sm:$0xff] %v186
    %195 = vst [vmem:[#allocation6 + $0x8] sm:$0xff] %v187
    %196 = vst [vmem:[#allocation6 + $0x10] sm:$0xff] %v188
    %197 = vst [vmem:[#allocation6 + $0x18] sm:$0xff] %v189
    %198 = vst [vmem:[#allocation6 + $0x20] sm:$0xff] %v190
    %199 = vst [vmem:[#allocation6 + $0x28] sm:$0xff] %v191
    %200 = vst [vmem:[#allocation6 + $0x30] sm:$0xff] %v192
    %201 = vst [vmem:[#allocation6 + $0x38] sm:$0xff] %v193
    // Predicated region
    $region18: #{tpu_custom_call.1} parent=1 // pred_check
      _
    $region19: #{tpu_custom_call.1} parent=1 // pred_check_branch
      %203 = sbr.rel (0) target = $region21
    $region20: #{tpu_custom_call.1} parent=1 // pred_region
      %s205 = ssub.s32 1024, 1024
      %206 = vsyncadd [#allocation4], %s205
      %s207 = sshll.u32 [#allocation5], 4
      %s208 = int_to_ptr.vmem [resolvable:$true] %s207
      %213 = dma.vmem_to_hbm [thread:$0]  %s208, 1024, %s3, [#allocation4], 256, 256, 16
    $region21: #{tpu_custom_call.1} parent=1 // pred_fallthru
      _
    // Predicated region
    $region22: #{tpu_custom_call.1} parent=1 // pred_check
      _
    $region23: #{tpu_custom_call.1} parent=1 // pred_check_branch
      %215 = sbr.rel (0) target = $region25
    $region24: #{tpu_custom_call.1} parent=1 // pred_region
      %s217 = ssub.s32 1024, 1024
      %218 = vsyncadd [#allocation7], %s217
      %s219 = sshll.u32 [#allocation6], 4
      %s220 = int_to_ptr.vmem [resolvable:$true] %s219
      %225 = dma.vmem_to_hbm [thread:$0]  %s220, 1024, %s4, [#allocation7], 256, 256, 16
    $region25: #{tpu_custom_call.1} parent=1 // pred_fallthru
      _
    // Predicated region
    $region26: #{tpu_custom_call.1} parent=1 // pred_check
      _
    $region27: #{tpu_custom_call.1} parent=1 // pred_check_branch
      %227 = sbr.rel (0) target = $region29
    $region28: #{tpu_custom_call.1} parent=1 // pred_region
      %228 = dma.done [#allocation4], 1024
    $region29: #{tpu_custom_call.1} parent=1 // pred_fallthru
      _
    // Predicated region
    $region30: #{tpu_custom_call.1} parent=1 // pred_check
      _
    $region31: #{tpu_custom_call.1} parent=1 // pred_check_branch
      %230 = sbr.rel (0) target = $region33
    $region32: #{tpu_custom_call.1} parent=1 // pred_region
      %231 = dma.done [#allocation7], 1024
    $region33: #{tpu_custom_call.1} parent=1 // pred_fallthru
      _
    %232 = vsyncpa [#allocation3], 1
    %233 = vsyncpa [#allocation4], 1
    %234 = vsyncpa [#allocation7], 1

</llo_original>
